<compile_context>
chip_gen: v7x
topology: tpu7x:2x2x1
jax: 0.10.0
libtpu: 0.0.40
codegen_flags: <defaults>
</compile_context>

<pallas_src>
import jax
import jax.numpy as jnp
from jax.experimental import pallas as pl
from jax.experimental.pallas import tpu as pltpu

# ----- scaled-down TumorNet hyperparameters (same op graph as the PyTorch module) -----
B = 2                      # batch
C_IN = 3                   # Conv2d in_channels
C_OUT = 16                 # Conv2d out_channels
K = 5                      # Conv2d kernel_size
STRIDE = 2                 # Conv2d stride
H = W = 21                 # input spatial size (scaled down from the 57600-feature original)
OH = (H - K) // STRIDE + 1          # 9
OW = (W - K) // STRIDE + 1          # 9
PH, PW = OH // 2, OW // 2           # 4, 4  (MaxPool2d(2,2) uses floor)
FLAT = C_OUT * PH * PW              # 256   (fc1 in_features)
HID = 64                            # fc1 out_features
ROWS = PH * PW * 4 * B              # 128 im2col rows: (ph, pw, window, batch)
PATCH = C_IN * K * K                # 75 im2col cols: (c_in, kh, kw)


# --------------------------- fused Pallas kernel ---------------------------

def tumornet_fused_kernel(p_ref, cw_ref, cb_ref, w1_ref, b1_ref, w2_ref, b2_ref,
                          o_ref, pool_ref):
    # ---- conv + relu (im2col matmul); result stays on-chip ----
    # p: (ROWS, PATCH) rows ordered (ph, pw, window, batch); cw: (PATCH, C_OUT)
    conv = jnp.dot(p_ref[...], cw_ref[...], preferred_element_type=jnp.float32)
    conv = jnp.maximum(conv + cb_ref[...], 0.0)                       # (128, 16)

    # ---- 2x2 max-pool + flatten into a lane-dense (B, FLAT) VMEM scratch ----
    # For pooled position s = ph*PW + pw, rows [s*4B : (s+1)*4B] hold the 4 window
    # candidates (2 batch rows each).  Max over the window, then drop the B pooled
    # channel vectors into lane slot [s*C_OUT : (s+1)*C_OUT].
    for s in range(PH * PW):
        base = s * 4 * B
        m = jnp.maximum(
            jnp.maximum(conv[base + 0 * B:base + 1 * B], conv[base + 1 * B:base + 2 * B]),
            jnp.maximum(conv[base + 2 * B:base + 3 * B], conv[base + 3 * B:base + 4 * B]))
        pool_ref[:, s * C_OUT:(s + 1) * C_OUT] = m                    # (B, C_OUT) slice

    pooled = pool_ref[...]                                            # (B, FLAT) = (2, 256)

    # ---- fc1 + relu ----
    h = jnp.dot(pooled, w1_ref[...], preferred_element_type=jnp.float32) + b1_ref[...]
    h = jnp.maximum(h, 0.0)
    # TODO(synk): Dropout(p=0.3) is identity in eval mode; training-time stochastic mask
    #             (pltpu.prng_seed/prng_random_bits) omitted.

    # ---- fc2 + sigmoid ----
    logit = jnp.dot(h, w2_ref[...], preferred_element_type=jnp.float32) + b2_ref[...]
    o_ref[...] = 1.0 / (1.0 + jnp.exp(-logit))                        # (B, 1)


# --------------------------- JAX glue ---------------------------

def _full_spec(shape):
    nd = len(shape)
    return pl.BlockSpec(shape, lambda i, _nd=nd: (0,) * _nd)


def im2col_pooled_order(x):
    """(B, C, H, W) -> (ROWS, PATCH).

    Rows ordered (ph, pw, dy, dx, b) over the 2*PH x 2*PW conv positions that survive
    the floor 2x2 pool; cols ordered (c_in, kh, kw) to match the conv-weight layout.
    """
    oh = jnp.arange(PH)[:, None] * 2 + jnp.arange(2)[None, :]               # (PH, 2)
    ow = jnp.arange(PW)[:, None] * 2 + jnp.arange(2)[None, :]               # (PW, 2)
    ih = oh[:, :, None] * STRIDE + jnp.arange(K)[None, None, :]             # (PH, 2, K)
    iw = ow[:, :, None] * STRIDE + jnp.arange(K)[None, None, :]             # (PW, 2, K)
    patches = x[:, :, ih[:, :, :, None, None, None], iw[None, None, None, :, :, :]]
    # -> (B, C, PH, dy, kh, PW, dx, kw); reorder to (ph, pw, dy, dx, b, c, kh, kw)
    patches = patches.transpose((2, 5, 3, 6, 0, 1, 4, 7))
    return patches.reshape(ROWS, PATCH)


def prepare_params(params):
    """One-time conversion of PyTorch-style params to the kernel's layouts."""
    cw, cb, w1, b1, w2, b2 = params
    cw2 = cw.reshape(C_OUT, PATCH).T                                   # (75, 16), (c,kh,kw) cols
    cb2 = cb.reshape(1, C_OUT)
    # fc1 weight: torch flatten order (c, ph, pw) -> kernel flatten order (ph, pw, c)
    w1p = (w1.reshape(HID, C_OUT, PH, PW)
             .transpose((0, 2, 3, 1))
             .reshape(HID, FLAT).T)                                    # (FLAT, HID)
    b1p = b1.reshape(1, HID)
    w2p = w2.T                                                         # (HID, 1)
    b2p = b2.reshape(1, 1)
    return cw2, cb2, w1p, b1p, w2p, b2p


def tumor_net_forward(x, prepared_params):
    cw2, cb2, w1p, b1p, w2p, b2p = prepared_params
    patches = im2col_nchw = im2col_pooled_order(x)                     # (128, 75)
    return pl.pallas_call(
        tumornet_fused_kernel,
        out_shape=jax.ShapeDtypeStruct((B, 1), jnp.float32),
        grid=(1,),
        in_specs=[_full_spec(patches.shape), _full_spec(cw2.shape), _full_spec(cb2.shape),
                  _full_spec(w1p.shape), _full_spec(b1p.shape),
                  _full_spec(w2p.shape), _full_spec(b2p.shape)],
        out_specs=_full_spec((B, 1)),
        scratch_shapes=[pltpu.VMEM((B, FLAT), jnp.float32)],
    )(patches, cw2, cb2, w1p, b1p, w2p, b2p)


def reference_forward(x, params):
    """Pure-JAX reference mirroring the PyTorch module (eval mode)."""
    cw, cb, w1, b1, w2, b2 = params
    conv = jax.lax.conv_general_dilated(
        x, cw, window_strides=(STRIDE, STRIDE), padding="VALID",
        dimension_numbers=("NCHW", "OIHW", "NCHW"),
        precision=jax.lax.Precision.HIGHEST)
    conv = jax.nn.relu(conv + cb[None, :, None, None])                 # (B, 16, 9, 9)
    y = conv[:, :, :2 * PH, :2 * PW].reshape(B, C_OUT, PH, 2, PW, 2)
    pooled = y.max(axis=(3, 5))                                        # (B, 16, 4, 4)
    flat = pooled.reshape(B, FLAT)                                     # torch flatten (c,ph,pw)
    h = jax.nn.relu(flat @ w1.T + b1)
    logit = h @ w2.T + b2
    return jax.nn.sigmoid(logit)


def init_params(key):
    """Deterministic init mimicking PyTorch's uniform(-1/sqrt(fan_in), 1/sqrt(fan_in))."""
    ks = jax.random.split(key, 6)

    def u(k, shape, fan_in):
        bound = 1.0 / jnp.sqrt(jnp.float32(fan_in))
        return jax.random.uniform(k, shape, jnp.float32, -bound, bound)

    cw = u(ks[0], (C_OUT, C_IN, K, K), C_IN * K * K)   # Conv2d weight
    cb = u(ks[1], (C_OUT,), C_IN * K * K)              # Conv2d bias
    w1 = u(ks[2], (HID, FLAT), FLAT)                   # fc1 weight (out, in) torch-style
    b1 = u(ks[3], (HID,), FLAT)                        # fc1 bias
    w2 = u(ks[4], (1, HID), HID)                       # fc2 weight
    b2 = u(ks[5], (1,), HID)                           # fc2 bias
    return cw, cb, w1, b1, w2, b2


if __name__ == "__main__":
    key = jax.random.PRNGKey(0)
    kx, kp = jax.random.split(key)
    x = jax.random.normal(kx, (B, C_IN, H, W), jnp.float32)   # NCHW, like the PyTorch module
    params = init_params(kp)
    prepared = prepare_params(params)                          # one-time layout prep

    fwd = jax.jit(tumor_net_forward)
    out = jax.block_until_ready(fwd(x, prepared))

    assert out.shape == (B, 1) and out.dtype == jnp.float32
    assert bool(jnp.all((out >= 0.0) & (out <= 1.0)))

    ref = jax.block_until_ready(reference_forward(x, params))
    assert bool(jnp.allclose(out, ref, atol=1e-3, rtol=1e-3)), (out, ref)

    print("KERNEL_OK")
</pallas_src>

<mosaic_0001>
module attributes {stable_mosaic.version = 11 : i64} {
  func.func @tumornet_fused_kernel(%arg0: i32, %arg1: memref<128x75xf32, #tpu.memory_space<vmem>>, %arg2: memref<75x16xf32, #tpu.memory_space<vmem>>, %arg3: memref<1x16xf32, #tpu.memory_space<vmem>>, %arg4: memref<256x64xf32, #tpu.memory_space<vmem>>, %arg5: memref<1x64xf32, #tpu.memory_space<vmem>>, %arg6: memref<64x1xf32, #tpu.memory_space<vmem>>, %arg7: memref<1x1xf32, #tpu.memory_space<vmem>>, %arg8: memref<2x1xf32, #tpu.memory_space<vmem>>, %arg9: memref<2x256xf32, #tpu.memory_space<vmem>>) attributes {dimension_semantics = [#tpu.dimension_semantics<arbitrary>], iteration_bounds = array<i64: 1>, scalar_prefetch = 0 : i64, scratch_operands = 1 : i64, tpu.core_type = #tpu.core_type<tc>, window_params = [{pipeline_mode = #tpu.pipeline_mode<synchronous>, transform_indices = @transform_0, window_bounds = array<i64: 128, 75>}, {pipeline_mode = #tpu.pipeline_mode<synchronous>, transform_indices = @transform_1, window_bounds = array<i64: 75, 16>}, {pipeline_mode = #tpu.pipeline_mode<synchronous>, transform_indices = @transform_2, window_bounds = array<i64: 1, 16>}, {pipeline_mode = #tpu.pipeline_mode<synchronous>, transform_indices = @transform_3, window_bounds = array<i64: 256, 64>}, {pipeline_mode = #tpu.pipeline_mode<synchronous>, transform_indices = @transform_4, window_bounds = array<i64: 1, 64>}, {pipeline_mode = #tpu.pipeline_mode<synchronous>, transform_indices = @transform_5, window_bounds = array<i64: 64, 1>}, {pipeline_mode = #tpu.pipeline_mode<synchronous>, transform_indices = @transform_6, window_bounds = array<i64: 1, 1>}, {pipeline_mode = #tpu.pipeline_mode<synchronous>, transform_indices = @transform_7, window_bounds = array<i64: 2, 1>}]} {
    %c0 = arith.constant 0 : index
    %c0_0 = arith.constant 0 : index
    %0 = vector.load %arg1[%c0, %c0_0] : memref<128x75xf32, #tpu.memory_space<vmem>>, vector<128x75xf32>
    %c0_1 = arith.constant 0 : index
    %c0_2 = arith.constant 0 : index
    %1 = vector.load %arg2[%c0_1, %c0_2] : memref<75x16xf32, #tpu.memory_space<vmem>>, vector<75x16xf32>
    %cst = arith.constant dense<0.000000e+00> : vector<128x16xf32>
    %2 = tpu.matmul %0, %1, %cst {dimension_numbers = #tpu.dot_dimension_numbers<[1], [0], [0], [1], [0, 0, 1, 1], [], []>} : vector<128x75xf32>, vector<75x16xf32>, vector<128x16xf32> -> vector<128x16xf32>
    %c0_3 = arith.constant 0 : index
    %c0_4 = arith.constant 0 : index
    %3 = vector.load %arg3[%c0_3, %c0_4] : memref<1x16xf32, #tpu.memory_space<vmem>>, vector<1x16xf32>
    %4 = vector.broadcast %3 : vector<1x16xf32> to vector<128x16xf32>
    %5 = arith.addf %2, %4 : vector<128x16xf32>
    %cst_5 = arith.constant 0.000000e+00 : f32
    %6 = vector.broadcast %cst_5 : f32 to vector<128x16xf32>
    %7 = arith.maximumf %5, %6 : vector<128x16xf32>
    %8 = vector.extract_strided_slice %7 {offsets = [0, 0], sizes = [2, 16], strides = [1, 1]} : vector<128x16xf32> to vector<2x16xf32>
    %9 = vector.extract_strided_slice %7 {offsets = [2, 0], sizes = [2, 16], strides = [1, 1]} : vector<128x16xf32> to vector<2x16xf32>
    %10 = arith.maximumf %8, %9 : vector<2x16xf32>
    %11 = vector.extract_strided_slice %7 {offsets = [4, 0], sizes = [2, 16], strides = [1, 1]} : vector<128x16xf32> to vector<2x16xf32>
    %12 = vector.extract_strided_slice %7 {offsets = [6, 0], sizes = [2, 16], strides = [1, 1]} : vector<128x16xf32> to vector<2x16xf32>
    %13 = arith.maximumf %11, %12 : vector<2x16xf32>
    %14 = arith.maximumf %10, %13 : vector<2x16xf32>
    %c0_6 = arith.constant 0 : index
    %c0_7 = arith.constant 0 : index
    %15 = vector.load %arg9[%c0_6, %c0_7] : memref<2x256xf32, #tpu.memory_space<vmem>>, vector<2x16xf32>
    tpu.vector_store %arg9[%c0_6, %c0_7], %14 {strides = array<i32>} : memref<2x256xf32, #tpu.memory_space<vmem>>, vector<2x16xf32>,
    %16 = vector.extract_strided_slice %7 {offsets = [8, 0], sizes = [2, 16], strides = [1, 1]} : vector<128x16xf32> to vector<2x16xf32>
    %17 = vector.extract_strided_slice %7 {offsets = [10, 0], sizes = [2, 16], strides = [1, 1]} : vector<128x16xf32> to vector<2x16xf32>
    %18 = arith.maximumf %16, %17 : vector<2x16xf32>
    %19 = vector.extract_strided_slice %7 {offsets = [12, 0], sizes = [2, 16], strides = [1, 1]} : vector<128x16xf32> to vector<2x16xf32>
    %20 = vector.extract_strided_slice %7 {offsets = [14, 0], sizes = [2, 16], strides = [1, 1]} : vector<128x16xf32> to vector<2x16xf32>
    %21 = arith.maximumf %19, %20 : vector<2x16xf32>
    %22 = arith.maximumf %18, %21 : vector<2x16xf32>
    %c0_8 = arith.constant 0 : index
    %c16 = arith.constant 16 : index
    %23 = vector.load %arg9[%c0_8, %c16] : memref<2x256xf32, #tpu.memory_space<vmem>>, vector<2x16xf32>
    tpu.vector_store %arg9[%c0_8, %c16], %22 {strides = array<i32>} : memref<2x256xf32, #tpu.memory_space<vmem>>, vector<2x16xf32>,
    %24 = vector.extract_strided_slice %7 {offsets = [16, 0], sizes = [2, 16], strides = [1, 1]} : vector<128x16xf32> to vector<2x16xf32>
    %25 = vector.extract_strided_slice %7 {offsets = [18, 0], sizes = [2, 16], strides = [1, 1]} : vector<128x16xf32> to vector<2x16xf32>
    %26 = arith.maximumf %24, %25 : vector<2x16xf32>
    %27 = vector.extract_strided_slice %7 {offsets = [20, 0], sizes = [2, 16], strides = [1, 1]} : vector<128x16xf32> to vector<2x16xf32>
    %28 = vector.extract_strided_slice %7 {offsets = [22, 0], sizes = [2, 16], strides = [1, 1]} : vector<128x16xf32> to vector<2x16xf32>
    %29 = arith.maximumf %27, %28 : vector<2x16xf32>
    %30 = arith.maximumf %26, %29 : vector<2x16xf32>
    %c0_9 = arith.constant 0 : index
    %c32 = arith.constant 32 : index
    %31 = vector.load %arg9[%c0_9, %c32] : memref<2x256xf32, #tpu.memory_space<vmem>>, vector<2x16xf32>
    tpu.vector_store %arg9[%c0_9, %c32], %30 {strides = array<i32>} : memref<2x256xf32, #tpu.memory_space<vmem>>, vector<2x16xf32>,
    %32 = vector.extract_strided_slice %7 {offsets = [24, 0], sizes = [2, 16], strides = [1, 1]} : vector<128x16xf32> to vector<2x16xf32>
    %33 = vector.extract_strided_slice %7 {offsets = [26, 0], sizes = [2, 16], strides = [1, 1]} : vector<128x16xf32> to vector<2x16xf32>
    %34 = arith.maximumf %32, %33 : vector<2x16xf32>
    %35 = vector.extract_strided_slice %7 {offsets = [28, 0], sizes = [2, 16], strides = [1, 1]} : vector<128x16xf32> to vector<2x16xf32>
    %36 = vector.extract_strided_slice %7 {offsets = [30, 0], sizes = [2, 16], strides = [1, 1]} : vector<128x16xf32> to vector<2x16xf32>
    %37 = arith.maximumf %35, %36 : vector<2x16xf32>
    %38 = arith.maximumf %34, %37 : vector<2x16xf32>
    %c0_10 = arith.constant 0 : index
    %c48 = arith.constant 48 : index
    %39 = vector.load %arg9[%c0_10, %c48] : memref<2x256xf32, #tpu.memory_space<vmem>>, vector<2x16xf32>
    tpu.vector_store %arg9[%c0_10, %c48], %38 {strides = array<i32>} : memref<2x256xf32, #tpu.memory_space<vmem>>, vector<2x16xf32>,
    %40 = vector.extract_strided_slice %7 {offsets = [32, 0], sizes = [2, 16], strides = [1, 1]} : vector<128x16xf32> to vector<2x16xf32>
    %41 = vector.extract_strided_slice %7 {offsets = [34, 0], sizes = [2, 16], strides = [1, 1]} : vector<128x16xf32> to vector<2x16xf32>
    %42 = arith.maximumf %40, %41 : vector<2x16xf32>
    %43 = vector.extract_strided_slice %7 {offsets = [36, 0], sizes = [2, 16], strides = [1, 1]} : vector<128x16xf32> to vector<2x16xf32>
    %44 = vector.extract_strided_slice %7 {offsets = [38, 0], sizes = [2, 16], strides = [1, 1]} : vector<128x16xf32> to vector<2x16xf32>
    %45 = arith.maximumf %43, %44 : vector<2x16xf32>
    %46 = arith.maximumf %42, %45 : vector<2x16xf32>
    %c0_11 = arith.constant 0 : index
    %c64 = arith.constant 64 : index
    %47 = vector.load %arg9[%c0_11, %c64] : memref<2x256xf32, #tpu.memory_space<vmem>>, vector<2x16xf32>
    tpu.vector_store %arg9[%c0_11, %c64], %46 {strides = array<i32>} : memref<2x256xf32, #tpu.memory_space<vmem>>, vector<2x16xf32>,
    %48 = vector.extract_strided_slice %7 {offsets = [40, 0], sizes = [2, 16], strides = [1, 1]} : vector<128x16xf32> to vector<2x16xf32>
    %49 = vector.extract_strided_slice %7 {offsets = [42, 0], sizes = [2, 16], strides = [1, 1]} : vector<128x16xf32> to vector<2x16xf32>
    %50 = arith.maximumf %48, %49 : vector<2x16xf32>
    %51 = vector.extract_strided_slice %7 {offsets = [44, 0], sizes = [2, 16], strides = [1, 1]} : vector<128x16xf32> to vector<2x16xf32>
    %52 = vector.extract_strided_slice %7 {offsets = [46, 0], sizes = [2, 16], strides = [1, 1]} : vector<128x16xf32> to vector<2x16xf32>
    %53 = arith.maximumf %51, %52 : vector<2x16xf32>
    %54 = arith.maximumf %50, %53 : vector<2x16xf32>
    %c0_12 = arith.constant 0 : index
    %c80 = arith.constant 80 : index
    %55 = vector.load %arg9[%c0_12, %c80] : memref<2x256xf32, #tpu.memory_space<vmem>>, vector<2x16xf32>
    tpu.vector_store %arg9[%c0_12, %c80], %54 {strides = array<i32>} : memref<2x256xf32, #tpu.memory_space<vmem>>, vector<2x16xf32>,
    %56 = vector.extract_strided_slice %7 {offsets = [48, 0], sizes = [2, 16], strides = [1, 1]} : vector<128x16xf32> to vector<2x16xf32>
    %57 = vector.extract_strided_slice %7 {offsets = [50, 0], sizes = [2, 16], strides = [1, 1]} : vector<128x16xf32> to vector<2x16xf32>
    %58 = arith.maximumf %56, %57 : vector<2x16xf32>
    %59 = vector.extract_strided_slice %7 {offsets = [52, 0], sizes = [2, 16], strides = [1, 1]} : vector<128x16xf32> to vector<2x16xf32>
    %60 = vector.extract_strided_slice %7 {offsets = [54, 0], sizes = [2, 16], strides = [1, 1]} : vector<128x16xf32> to vector<2x16xf32>
    %61 = arith.maximumf %59, %60 : vector<2x16xf32>
    %62 = arith.maximumf %58, %61 : vector<2x16xf32>
    %c0_13 = arith.constant 0 : index
    %c96 = arith.constant 96 : index
    %63 = vector.load %arg9[%c0_13, %c96] : memref<2x256xf32, #tpu.memory_space<vmem>>, vector<2x16xf32>
    tpu.vector_store %arg9[%c0_13, %c96], %62 {strides = array<i32>} : memref<2x256xf32, #tpu.memory_space<vmem>>, vector<2x16xf32>,
    %64 = vector.extract_strided_slice %7 {offsets = [56, 0], sizes = [2, 16], strides = [1, 1]} : vector<128x16xf32> to vector<2x16xf32>
    %65 = vector.extract_strided_slice %7 {offsets = [58, 0], sizes = [2, 16], strides = [1, 1]} : vector<128x16xf32> to vector<2x16xf32>
    %66 = arith.maximumf %64, %65 : vector<2x16xf32>
    %67 = vector.extract_strided_slice %7 {offsets = [60, 0], sizes = [2, 16], strides = [1, 1]} : vector<128x16xf32> to vector<2x16xf32>
    %68 = vector.extract_strided_slice %7 {offsets = [62, 0], sizes = [2, 16], strides = [1, 1]} : vector<128x16xf32> to vector<2x16xf32>
    %69 = arith.maximumf %67, %68 : vector<2x16xf32>
    %70 = arith.maximumf %66, %69 : vector<2x16xf32>
    %c0_14 = arith.constant 0 : index
    %c112 = arith.constant 112 : index
    %71 = vector.load %arg9[%c0_14, %c112] : memref<2x256xf32, #tpu.memory_space<vmem>>, vector<2x16xf32>
    tpu.vector_store %arg9[%c0_14, %c112], %70 {strides = array<i32>} : memref<2x256xf32, #tpu.memory_space<vmem>>, vector<2x16xf32>,
    %72 = vector.extract_strided_slice %7 {offsets = [64, 0], sizes = [2, 16], strides = [1, 1]} : vector<128x16xf32> to vector<2x16xf32>
    %73 = vector.extract_strided_slice %7 {offsets = [66, 0], sizes = [2, 16], strides = [1, 1]} : vector<128x16xf32> to vector<2x16xf32>
    %74 = arith.maximumf %72, %73 : vector<2x16xf32>
    %75 = vector.extract_strided_slice %7 {offsets = [68, 0], sizes = [2, 16], strides = [1, 1]} : vector<128x16xf32> to vector<2x16xf32>
    %76 = vector.extract_strided_slice %7 {offsets = [70, 0], sizes = [2, 16], strides = [1, 1]} : vector<128x16xf32> to vector<2x16xf32>
    %77 = arith.maximumf %75, %76 : vector<2x16xf32>
    %78 = arith.maximumf %74, %77 : vector<2x16xf32>
    %c0_15 = arith.constant 0 : index
    %c128 = arith.constant 128 : index
    %79 = vector.load %arg9[%c0_15, %c128] : memref<2x256xf32, #tpu.memory_space<vmem>>, vector<2x16xf32>
    tpu.vector_store %arg9[%c0_15, %c128], %78 {strides = array<i32>} : memref<2x256xf32, #tpu.memory_space<vmem>>, vector<2x16xf32>,
    %80 = vector.extract_strided_slice %7 {offsets = [72, 0], sizes = [2, 16], strides = [1, 1]} : vector<128x16xf32> to vector<2x16xf32>
    %81 = vector.extract_strided_slice %7 {offsets = [74, 0], sizes = [2, 16], strides = [1, 1]} : vector<128x16xf32> to vector<2x16xf32>
    %82 = arith.maximumf %80, %81 : vector<2x16xf32>
    %83 = vector.extract_strided_slice %7 {offsets = [76, 0], sizes = [2, 16], strides = [1, 1]} : vector<128x16xf32> to vector<2x16xf32>
    %84 = vector.extract_strided_slice %7 {offsets = [78, 0], sizes = [2, 16], strides = [1, 1]} : vector<128x16xf32> to vector<2x16xf32>
    %85 = arith.maximumf %83, %84 : vector<2x16xf32>
    %86 = arith.maximumf %82, %85 : vector<2x16xf32>
    %c0_16 = arith.constant 0 : index
    %c144 = arith.constant 144 : index
    %87 = vector.load %arg9[%c0_16, %c144] : memref<2x256xf32, #tpu.memory_space<vmem>>, vector<2x16xf32>
    tpu.vector_store %arg9[%c0_16, %c144], %86 {strides = array<i32>} : memref<2x256xf32, #tpu.memory_space<vmem>>, vector<2x16xf32>,
    %88 = vector.extract_strided_slice %7 {offsets = [80, 0], sizes = [2, 16], strides = [1, 1]} : vector<128x16xf32> to vector<2x16xf32>
    %89 = vector.extract_strided_slice %7 {offsets = [82, 0], sizes = [2, 16], strides = [1, 1]} : vector<128x16xf32> to vector<2x16xf32>
    %90 = arith.maximumf %88, %89 : vector<2x16xf32>
    %91 = vector.extract_strided_slice %7 {offsets = [84, 0], sizes = [2, 16], strides = [1, 1]} : vector<128x16xf32> to vector<2x16xf32>
    %92 = vector.extract_strided_slice %7 {offsets = [86, 0], sizes = [2, 16], strides = [1, 1]} : vector<128x16xf32> to vector<2x16xf32>
    %93 = arith.maximumf %91, %92 : vector<2x16xf32>
    %94 = arith.maximumf %90, %93 : vector<2x16xf32>
    %c0_17 = arith.constant 0 : index
    %c160 = arith.constant 160 : index
    %95 = vector.load %arg9[%c0_17, %c160] : memref<2x256xf32, #tpu.memory_space<vmem>>, vector<2x16xf32>
    tpu.vector_store %arg9[%c0_17, %c160], %94 {strides = array<i32>} : memref<2x256xf32, #tpu.memory_space<vmem>>, vector<2x16xf32>,
    %96 = vector.extract_strided_slice %7 {offsets = [88, 0], sizes = [2, 16], strides = [1, 1]} : vector<128x16xf32> to vector<2x16xf32>
    %97 = vector.extract_strided_slice %7 {offsets = [90, 0], sizes = [2, 16], strides = [1, 1]} : vector<128x16xf32> to vector<2x16xf32>
    %98 = arith.maximumf %96, %97 : vector<2x16xf32>
    %99 = vector.extract_strided_slice %7 {offsets = [92, 0], sizes = [2, 16], strides = [1, 1]} : vector<128x16xf32> to vector<2x16xf32>
    %100 = vector.extract_strided_slice %7 {offsets = [94, 0], sizes = [2, 16], strides = [1, 1]} : vector<128x16xf32> to vector<2x16xf32>
    %101 = arith.maximumf %99, %100 : vector<2x16xf32>
    %102 = arith.maximumf %98, %101 : vector<2x16xf32>
    %c0_18 = arith.constant 0 : index
    %c176 = arith.constant 176 : index
    %103 = vector.load %arg9[%c0_18, %c176] : memref<2x256xf32, #tpu.memory_space<vmem>>, vector<2x16xf32>
    tpu.vector_store %arg9[%c0_18, %c176], %102 {strides = array<i32>} : memref<2x256xf32, #tpu.memory_space<vmem>>, vector<2x16xf32>,
    %104 = vector.extract_strided_slice %7 {offsets = [96, 0], sizes = [2, 16], strides = [1, 1]} : vector<128x16xf32> to vector<2x16xf32>
    %105 = vector.extract_strided_slice %7 {offsets = [98, 0], sizes = [2, 16], strides = [1, 1]} : vector<128x16xf32> to vector<2x16xf32>
    %106 = arith.maximumf %104, %105 : vector<2x16xf32>
    %107 = vector.extract_strided_slice %7 {offsets = [100, 0], sizes = [2, 16], strides = [1, 1]} : vector<128x16xf32> to vector<2x16xf32>
    %108 = vector.extract_strided_slice %7 {offsets = [102, 0], sizes = [2, 16], strides = [1, 1]} : vector<128x16xf32> to vector<2x16xf32>
    %109 = arith.maximumf %107, %108 : vector<2x16xf32>
    %110 = arith.maximumf %106, %109 : vector<2x16xf32>
    %c0_19 = arith.constant 0 : index
    %c192 = arith.constant 192 : index
    %111 = vector.load %arg9[%c0_19, %c192] : memref<2x256xf32, #tpu.memory_space<vmem>>, vector<2x16xf32>
    tpu.vector_store %arg9[%c0_19, %c192], %110 {strides = array<i32>} : memref<2x256xf32, #tpu.memory_space<vmem>>, vector<2x16xf32>,
    %112 = vector.extract_strided_slice %7 {offsets = [104, 0], sizes = [2, 16], strides = [1, 1]} : vector<128x16xf32> to vector<2x16xf32>
    %113 = vector.extract_strided_slice %7 {offsets = [106, 0], sizes = [2, 16], strides = [1, 1]} : vector<128x16xf32> to vector<2x16xf32>
    %114 = arith.maximumf %112, %113 : vector<2x16xf32>
    %115 = vector.extract_strided_slice %7 {offsets = [108, 0], sizes = [2, 16], strides = [1, 1]} : vector<128x16xf32> to vector<2x16xf32>
    %116 = vector.extract_strided_slice %7 {offsets = [110, 0], sizes = [2, 16], strides = [1, 1]} : vector<128x16xf32> to vector<2x16xf32>
    %117 = arith.maximumf %115, %116 : vector<2x16xf32>
    %118 = arith.maximumf %114, %117 : vector<2x16xf32>
    %c0_20 = arith.constant 0 : index
    %c208 = arith.constant 208 : index
    %119 = vector.load %arg9[%c0_20, %c208] : memref<2x256xf32, #tpu.memory_space<vmem>>, vector<2x16xf32>
    tpu.vector_store %arg9[%c0_20, %c208], %118 {strides = array<i32>} : memref<2x256xf32, #tpu.memory_space<vmem>>, vector<2x16xf32>,
    %120 = vector.extract_strided_slice %7 {offsets = [112, 0], sizes = [2, 16], strides = [1, 1]} : vector<128x16xf32> to vector<2x16xf32>
    %121 = vector.extract_strided_slice %7 {offsets = [114, 0], sizes = [2, 16], strides = [1, 1]} : vector<128x16xf32> to vector<2x16xf32>
    %122 = arith.maximumf %120, %121 : vector<2x16xf32>
    %123 = vector.extract_strided_slice %7 {offsets = [116, 0], sizes = [2, 16], strides = [1, 1]} : vector<128x16xf32> to vector<2x16xf32>
    %124 = vector.extract_strided_slice %7 {offsets = [118, 0], sizes = [2, 16], strides = [1, 1]} : vector<128x16xf32> to vector<2x16xf32>
    %125 = arith.maximumf %123, %124 : vector<2x16xf32>
    %126 = arith.maximumf %122, %125 : vector<2x16xf32>
    %c0_21 = arith.constant 0 : index
    %c224 = arith.constant 224 : index
    %127 = vector.load %arg9[%c0_21, %c224] : memref<2x256xf32, #tpu.memory_space<vmem>>, vector<2x16xf32>
    tpu.vector_store %arg9[%c0_21, %c224], %126 {strides = array<i32>} : memref<2x256xf32, #tpu.memory_space<vmem>>, vector<2x16xf32>,
    %128 = vector.extract_strided_slice %7 {offsets = [120, 0], sizes = [2, 16], strides = [1, 1]} : vector<128x16xf32> to vector<2x16xf32>
    %129 = vector.extract_strided_slice %7 {offsets = [122, 0], sizes = [2, 16], strides = [1, 1]} : vector<128x16xf32> to vector<2x16xf32>
    %130 = arith.maximumf %128, %129 : vector<2x16xf32>
    %131 = vector.extract_strided_slice %7 {offsets = [124, 0], sizes = [2, 16], strides = [1, 1]} : vector<128x16xf32> to vector<2x16xf32>
    %132 = vector.extract_strided_slice %7 {offsets = [126, 0], sizes = [2, 16], strides = [1, 1]} : vector<128x16xf32> to vector<2x16xf32>
    %133 = arith.maximumf %131, %132 : vector<2x16xf32>
    %134 = arith.maximumf %130, %133 : vector<2x16xf32>
    %c0_22 = arith.constant 0 : index
    %c240 = arith.constant 240 : index
    %135 = vector.load %arg9[%c0_22, %c240] : memref<2x256xf32, #tpu.memory_space<vmem>>, vector<2x16xf32>
    tpu.vector_store %arg9[%c0_22, %c240], %134 {strides = array<i32>} : memref<2x256xf32, #tpu.memory_space<vmem>>, vector<2x16xf32>,
    %c0_23 = arith.constant 0 : index
    %c0_24 = arith.constant 0 : index
    %136 = vector.load %arg9[%c0_23, %c0_24] : memref<2x256xf32, #tpu.memory_space<vmem>>, vector<2x256xf32>
    %c0_25 = arith.constant 0 : index
    %c0_26 = arith.constant 0 : index
    %137 = vector.load %arg4[%c0_25, %c0_26] : memref<256x64xf32, #tpu.memory_space<vmem>>, vector<256x64xf32>
    %cst_27 = arith.constant dense<0.000000e+00> : vector<2x64xf32>
    %138 = tpu.matmul %136, %137, %cst_27 {dimension_numbers = #tpu.dot_dimension_numbers<[1], [0], [0], [1], [0, 0, 1, 1], [], []>} : vector<2x256xf32>, vector<256x64xf32>, vector<2x64xf32> -> vector<2x64xf32>
    %c0_28 = arith.constant 0 : index
    %c0_29 = arith.constant 0 : index
    %139 = vector.load %arg5[%c0_28, %c0_29] : memref<1x64xf32, #tpu.memory_space<vmem>>, vector<1x64xf32>
    %140 = vector.broadcast %139 : vector<1x64xf32> to vector<2x64xf32>
    %141 = arith.addf %138, %140 : vector<2x64xf32>
    %cst_30 = arith.constant 0.000000e+00 : f32
    %142 = vector.broadcast %cst_30 : f32 to vector<2x64xf32>
    %143 = arith.maximumf %141, %142 : vector<2x64xf32>
    %c0_31 = arith.constant 0 : index
    %c0_32 = arith.constant 0 : index
    %144 = vector.load %arg6[%c0_31, %c0_32] : memref<64x1xf32, #tpu.memory_space<vmem>>, vector<64x1xf32>
    %cst_33 = arith.constant dense<0.000000e+00> : vector<2x1xf32>
    %145 = tpu.matmul %143, %144, %cst_33 {dimension_numbers = #tpu.dot_dimension_numbers<[1], [0], [0], [1], [0, 0, 1, 1], [], []>} : vector<2x64xf32>, vector<64x1xf32>, vector<2x1xf32> -> vector<2x1xf32>
    %c0_34 = arith.constant 0 : index
    %c0_35 = arith.constant 0 : index
    %146 = vector.load %arg7[%c0_34, %c0_35] : memref<1x1xf32, #tpu.memory_space<vmem>>, vector<1x1xf32>
    %147 = vector.broadcast %146 : vector<1x1xf32> to vector<2x1xf32>
    %148 = arith.addf %145, %147 : vector<2x1xf32>
    %cst_36 = arith.constant 0.000000e+00 : f32
    %149 = vector.broadcast %cst_36 : f32 to vector<2x1xf32>
    %150 = arith.subf %149, %148 : vector<2x1xf32>
    %151 = math.exp %150 : vector<2x1xf32>
    %cst_37 = arith.constant 1.000000e+00 : f32
    %152 = vector.broadcast %cst_37 : f32 to vector<2x1xf32>
    %153 = arith.addf %152, %151 : vector<2x1xf32>
    %cst_38 = arith.constant 1.000000e+00 : f32
    %154 = vector.broadcast %cst_38 : f32 to vector<2x1xf32>
    %155 = arith.divf %154, %153 : vector<2x1xf32>
    %c0_39 = arith.constant 0 : index
    %c0_40 = arith.constant 0 : index
    %156 = vector.load %arg8[%c0_39, %c0_40] : memref<2x1xf32, #tpu.memory_space<vmem>>, vector<2x1xf32>
    tpu.vector_store %arg8[%c0_39, %c0_40], %155 {strides = array<i32>} : memref<2x1xf32, #tpu.memory_space<vmem>>, vector<2x1xf32>,
    return
  }
  func.func @transform_0(%arg0: i32) -> (i32, i32) {
    %c0_i32 = arith.constant 0 : i32
    %c0_i32_0 = arith.constant 0 : i32
    %c0_i32_1 = arith.constant 0 : i32
    return %c0_i32, %c0_i32_0 : i32, i32
  }
  func.func @transform_1(%arg0: i32) -> (i32, i32) {
    %c0_i32 = arith.constant 0 : i32
    %c0_i32_0 = arith.constant 0 : i32
    %c0_i32_1 = arith.constant 0 : i32
    return %c0_i32, %c0_i32_0 : i32, i32
  }
  func.func @transform_2(%arg0: i32) -> (i32, i32) {
    %c0_i32 = arith.constant 0 : i32
    %c0_i32_0 = arith.constant 0 : i32
    %c0_i32_1 = arith.constant 0 : i32
    return %c0_i32, %c0_i32_0 : i32, i32
  }
  func.func @transform_3(%arg0: i32) -> (i32, i32) {
    %c0_i32 = arith.constant 0 : i32
    %c0_i32_0 = arith.constant 0 : i32
    %c0_i32_1 = arith.constant 0 : i32
    return %c0_i32, %c0_i32_0 : i32, i32
  }
  func.func @transform_4(%arg0: i32) -> (i32, i32) {
    %c0_i32 = arith.constant 0 : i32
    %c0_i32_0 = arith.constant 0 : i32
    %c0_i32_1 = arith.constant 0 : i32
    return %c0_i32, %c0_i32_0 : i32, i32
  }
  func.func @transform_5(%arg0: i32) -> (i32, i32) {
    %c0_i32 = arith.constant 0 : i32
    %c0_i32_0 = arith.constant 0 : i32
    %c0_i32_1 = arith.constant 0 : i32
    return %c0_i32, %c0_i32_0 : i32, i32
  }
  func.func @transform_6(%arg0: i32) -> (i32, i32) {
    %c0_i32 = arith.constant 0 : i32
    %c0_i32_0 = arith.constant 0 : i32
    %c0_i32_1 = arith.constant 0 : i32
    return %c0_i32, %c0_i32_0 : i32, i32
  }
  func.func @transform_7(%arg0: i32) -> (i32, i32) {
    %c0_i32 = arith.constant 0 : i32
    %c0_i32_0 = arith.constant 0 : i32
    %c0_i32_1 = arith.constant 0 : i32
    return %c0_i32, %c0_i32_0 : i32, i32
  }
}

</mosaic_0001>

<llo_original>
// kernel: tumor_net_forward.1
$region0: #{tumor_net_forward.1}
  #allocation0 [shape = 'u32[]', space=smem, size = 0x4, offset = 0x4, fixed_abs, tag = 'smem constant byte address 0x4 - core index']
  #allocation1 [shape = 'u32[144,128]{1,0:T(1,128)}', space=vmem, size = 0x12000, scoped, tag = 'internal scratch']
  #allocation2 [shape = 'f32[2,256]{1,0:T(2,128)}', space=vmem, size = 0x800, scoped, tag = 'scratch operand']
  #allocation3 [shape = 'f32[1,1]{1,0:T(1,128)S(1)}', space=vmem, size = 0x200, scoped, tag = 'scoped memory for tumor_net_forward.1']
  %s0 = inlined_call_operand.vmem [shape: f32[128,75], index: 0, kind: input, shape index: {}]
  %s1 = inlined_call_operand.vmem [shape: f32[75,16], index: 1, kind: input, shape index: {}]
  %s2 = inlined_call_operand.vmem [shape: f32[1,16], index: 2, kind: input, shape index: {}]
  %s3 = inlined_call_operand.vmem [shape: f32[256,64], index: 3, kind: input, shape index: {}]
  %s4 = inlined_call_operand.vmem [shape: f32[1,64], index: 4, kind: input, shape index: {}]
  %s5 = inlined_call_operand.vmem [shape: f32[64,1], index: 5, kind: input, shape index: {}]
  %s6 = inlined_call_operand.<no memory space> [shape: f32[1,1], index: 6, kind: input, shape index: {}]
  %s7 = inlined_call_operand.vmem [shape: f32[2,1], index: 7, kind: output, shape index: {}]
  %s8 = sld [smem:[#allocation0]]
  $region38: #{tumor_net_forward.1} parent=0
    _
  %s10 = ssub.s32 1, %s8
  %s11 = scalar_select 0, %s10, %s8
  %v12 = vstv %s6
  %13 = vst [vmem:[#allocation3] sm:$0x1] %v12
  // Predicated region
  $region2: #{tumor_net_forward.1} parent=0 // pred_check
    _
  $region3: #{tumor_net_forward.1} parent=0 // pred_check_branch
    %15 = sbr.rel (0) target = $region5
  $region4: #{tumor_net_forward.1} parent=0 // pred_region
    _
  $region5: #{tumor_net_forward.1} parent=0 // pred_fallthru
    _
  // Predicated region
  $region6: #{tumor_net_forward.1} parent=0 // pred_check
    _
  $region7: #{tumor_net_forward.1} parent=0 // pred_check_branch
    %17 = sbr.rel (0) target = $region9
  $region8: #{tumor_net_forward.1} parent=0 // pred_region
    _
  $region9: #{tumor_net_forward.1} parent=0 // pred_fallthru
    _
  // Predicated region
  $region10: #{tumor_net_forward.1} parent=0 // pred_check
    _
  $region11: #{tumor_net_forward.1} parent=0 // pred_check_branch
    %19 = sbr.rel (0) target = $region13
  $region12: #{tumor_net_forward.1} parent=0 // pred_region
    _
  $region13: #{tumor_net_forward.1} parent=0 // pred_fallthru
    _
  // Predicated region
  $region14: #{tumor_net_forward.1} parent=0 // pred_check
    _
  $region15: #{tumor_net_forward.1} parent=0 // pred_check_branch
    %21 = sbr.rel (0) target = $region17
  $region16: #{tumor_net_forward.1} parent=0 // pred_region
    _
  $region17: #{tumor_net_forward.1} parent=0 // pred_fallthru
    _
  // Predicated region
  $region18: #{tumor_net_forward.1} parent=0 // pred_check
    _
  $region19: #{tumor_net_forward.1} parent=0 // pred_check_branch
    %23 = sbr.rel (0) target = $region21
  $region20: #{tumor_net_forward.1} parent=0 // pred_region
    _
  $region21: #{tumor_net_forward.1} parent=0 // pred_fallthru
    _
  // Predicated region
  $region22: #{tumor_net_forward.1} parent=0 // pred_check
    _
  $region23: #{tumor_net_forward.1} parent=0 // pred_check_branch
    %25 = sbr.rel (0) target = $region25
  $region24: #{tumor_net_forward.1} parent=0 // pred_region
    _
  $region25: #{tumor_net_forward.1} parent=0 // pred_fallthru
    _
  // Predicated region
  $region26: #{tumor_net_forward.1} parent=0 // pred_check
    _
  $region27: #{tumor_net_forward.1} parent=0 // pred_check_branch
    %27 = sbr.rel (0) target = $region29
  $region28: #{tumor_net_forward.1} parent=0 // pred_region
    _
  $region29: #{tumor_net_forward.1} parent=0 // pred_fallthru
    _
  %v28 = vld [vmem:[%s0] sm:$0xff]
  %v29 = vld [vmem:[%s0 + $0x8] sm:$0xff]
  %v30 = vld [vmem:[%s0 + $0x10] sm:$0xff]
  %v31 = vld [vmem:[%s0 + $0x18] sm:$0xff]
  %v32 = vld [vmem:[%s0 + $0x20] sm:$0xff]
  %v33 = vld [vmem:[%s0 + $0x28] sm:$0xff]
  %v34 = vld [vmem:[%s0 + $0x30] sm:$0xff]
  %v35 = vld [vmem:[%s0 + $0x38] sm:$0xff]
  %v36 = vld [vmem:[%s0 + $0x40] sm:$0xff]
  %v37 = vld [vmem:[%s0 + $0x48] sm:$0xff]
  %v38 = vld [vmem:[%s0 + $0x50] sm:$0xff]
  %v39 = vld [vmem:[%s0 + $0x58] sm:$0xff]
  %v40 = vld [vmem:[%s0 + $0x60] sm:$0xff]
  %v41 = vld [vmem:[%s0 + $0x68] sm:$0xff]
  %v42 = vld [vmem:[%s0 + $0x70] sm:$0xff]
  %v43 = vld [vmem:[%s0 + $0x78] sm:$0xff]
  %v44 = vld [vmem:[%s1] sm:$0xff]
  %v45 = vld [vmem:[%s1 + $0x8] sm:$0xff]
  %v46 = vld [vmem:[%s1 + $0x10] sm:$0xff]
  %v47 = vld [vmem:[%s1 + $0x18] sm:$0xff]
  %v48 = vld [vmem:[%s1 + $0x20] sm:$0xff]
  %v49 = vld [vmem:[%s1 + $0x28] sm:$0xff]
  %v50 = vld [vmem:[%s1 + $0x30] sm:$0xff]
  %v51 = vld [vmem:[%s1 + $0x38] sm:$0xff]
  %v52 = vld [vmem:[%s1 + $0x40] sm:$0xff]
  %v53 = vld [vmem:[%s1 + $0x48] sm:$0x7]
  %v54 = vld [vmem:[%s2] sm:$0x1]
  %v56 = vlaneseq
  %v57 = vshrl.u32 %v56, 7
  %v58 = vsub.s32 0, %v57
  %v59 = vrot.slane %v54, %v58
  %vm61 = vcmask 613376
  %v63 = vsel %vm61, %v28, 0
  %v66 = vsel %vm61, %v29, 0
  %v69 = vsel %vm61, %v30, 0
  %v72 = vsel %vm61, %v31, 0
  %v75 = vsel %vm61, %v32, 0
  %v78 = vsel %vm61, %v33, 0
  %v81 = vsel %vm61, %v34, 0
  %v84 = vsel %vm61, %v35, 0
  %v87 = vsel %vm61, %v36, 0
  %v90 = vsel %vm61, %v37, 0
  %v93 = vsel %vm61, %v38, 0
  %v96 = vsel %vm61, %v39, 0
  %v99 = vsel %vm61, %v40, 0
  %v102 = vsel %vm61, %v41, 0
  %v105 = vsel %vm61, %v42, 0
  %v108 = vsel %vm61, %v43, 0
  %vm110 = vcmask 1042432
  %v112 = vsel %vm110, %v53, 0
  %114 = vmatprep.subr.mxu0 0.0
  %115 = vmatpush1.msra.mxu0 %v44
  %116 = vmatprep.subr.mxu0 0.0
  %117 = vmatpush1.msra.mxu0 %v45
  %118 = vmatprep.subr.mxu0 0.0
  %119 = vmatpush1.msra.mxu0 %v46
  %120 = vmatprep.subr.mxu0 0.0
  %121 = vmatpush1.msra.mxu0 %v47
  %122 = vmatprep.subr.mxu0 0.0
  %123 = vmatpush1.msra.mxu0 %v48
  %124 = vmatprep.subr.mxu0 0.0
  %125 = vmatpush1.msra.mxu0 %v49
  %126 = vmatprep.subr.mxu0 0.0
  %127 = vmatpush1.msra.mxu0 %v50
  %128 = vmatprep.subr.mxu0 0.0
  %129 = vmatpush1.msra.mxu0 %v51
  %130 = vmatprep.subr.mxu0 0.0
  %131 = vmatpush1.msra.mxu0 %v52
  %132 = vmatprep.subr.mxu0 0.0
  %133 = vmatpush1.msra.mxu0 %v112
  %134 = vmatprep.subr.mxu0 0.0
  %135 = vmatpush1.msra.mxu0 0.0
  %136 = vmatprep.subr.mxu0 0.0
  %137 = vmatpush1.msra.mxu0 0.0
  %138 = vmatprep.subr.mxu0 0.0
  %139 = vmatpush1.msra.mxu0 0.0
  %140 = vmatprep.subr.mxu0 0.0
  %141 = vmatpush1.msra.mxu0 0.0
  %142 = vmatprep.subr.mxu0 0.0
  %143 = vmatpush1.msra.mxu0 0.0
  %144 = vmatprep.subr.mxu0 0.0
  %145 = vmatpush1.msra.mxu0 0.0
  %146 = vmatprep.subr.mxu0 0.0
  %147 = vmatpush1.msra.mxu0 0.0
  %148 = vmatprep.subr.mxu0 0.0
  %149 = vmatpush1.msra.mxu0 0.0
  %150 = vmatprep.subr.mxu0 0.0
  %151 = vmatpush1.msra.mxu0 0.0
  %152 = vmatprep.subr.mxu0 0.0
  %153 = vmatpush1.msra.mxu0 0.0
  %154 = vmatprep.subr.mxu0 0.0
  %155 = vmatpush1.msra.mxu0 0.0
  %156 = vmatprep.subr.mxu0 0.0
  %157 = vmatpush1.msra.mxu0 0.0
  %158 = vmatprep.subr.mxu0 0.0
  %159 = vmatpush1.msra.mxu0 0.0
  %160 = vmatprep.subr.mxu0 0.0
  %161 = vmatpush1.msra.mxu0 0.0
  %162 = vmatprep.subr.mxu0 0.0
  %163 = vmatpush1.msra.mxu0 0.0
  %164 = vmatprep.subr.mxu0 0.0
  %165 = vmatpush1.msra.mxu0 0.0
  %166 = vmatprep.subr.mxu0 0.0
  %167 = vmatpush1.msra.mxu0 0.0
  %168 = vmatprep.subr.mxu0 0.0
  %169 = vmatpush1.msra.mxu0 0.0
  %170 = vmatprep.subr.mxu0 0.0
  %171 = vmatpush1.msra.mxu0 0.0
  %172 = vmatprep.subr.mxu0 0.0
  %173 = vmatpush1.msra.mxu0 0.0
  %174 = vmatprep.subr.mxu0 0.0
  %175 = vmatpush1.msra.mxu0 0.0
  %176 = vmatprep.subr.mxu0 0.0
  %177 = vmatpush1.msra.mxu0 0.0
  %178 = vmatprep.mubr.f32.mxu0 0.0
  %179 = vmatmul.mubr.f32.gmra.mrb[0].mxu0 %v63
  %v180 = vpop.f32.mrb[0].mxu0
  %v181 = vadd.f32 %v59, %v180
  %v182 = vpop.f32.mrb[0].mxu0
  %183 = vmatprep.mubr.f32.mxu0 0.0
  %184 = vmatmul.mubr.f32.gmra.mrb[0].mxu0 %v66
  %v185 = vpop.f32.mrb[0].mxu0
  %v186 = vadd.f32 %v59, %v185
  %v187 = vpop.f32.mrb[0].mxu0
  %188 = vmatprep.mubr.f32.mxu0 0.0
  %189 = vmatmul.mubr.f32.gmra.mrb[0].mxu0 %v69
  %v190 = vpop.f32.mrb[0].mxu0
  %v191 = vadd.f32 %v59, %v190
  %v192 = vpop.f32.mrb[0].mxu0
  %193 = vmatprep.mubr.f32.mxu0 0.0
  %194 = vmatmul.mubr.f32.gmra.mrb[0].mxu0 %v72
  %v195 = vpop.f32.mrb[0].mxu0
  %v196 = vadd.f32 %v59, %v195
  %v197 = vpop.f32.mrb[0].mxu0
  %198 = vmatprep.mubr.f32.mxu0 0.0
  %199 = vmatmul.mubr.f32.gmra.mrb[0].mxu0 %v75
  %v200 = vpop.f32.mrb[0].mxu0
  %v201 = vadd.f32 %v59, %v200
  %v202 = vpop.f32.mrb[0].mxu0
  %203 = vmatprep.mubr.f32.mxu0 0.0
  %204 = vmatmul.mubr.f32.gmra.mrb[0].mxu0 %v78
  %v205 = vpop.f32.mrb[0].mxu0
  %v206 = vadd.f32 %v59, %v205
  %v207 = vpop.f32.mrb[0].mxu0
  %208 = vmatprep.mubr.f32.mxu0 0.0
  %209 = vmatmul.mubr.f32.gmra.mrb[0].mxu0 %v81
  %v210 = vpop.f32.mrb[0].mxu0
  %v211 = vadd.f32 %v59, %v210
  %v212 = vpop.f32.mrb[0].mxu0
  %213 = vmatprep.mubr.f32.mxu0 0.0
  %214 = vmatmul.mubr.f32.gmra.mrb[0].mxu0 %v84
  %v215 = vpop.f32.mrb[0].mxu0
  %v216 = vadd.f32 %v59, %v215
  %v217 = vpop.f32.mrb[0].mxu0
  %218 = vmatprep.mubr.f32.mxu0 0.0
  %219 = vmatmul.mubr.f32.gmra.mrb[0].mxu0 %v87
  %v220 = vpop.f32.mrb[0].mxu0
  %v221 = vadd.f32 %v59, %v220
  %v222 = vpop.f32.mrb[0].mxu0
  %223 = vmatprep.mubr.f32.mxu0 0.0
  %224 = vmatmul.mubr.f32.gmra.mrb[0].mxu0 %v90
  %v225 = vpop.f32.mrb[0].mxu0
  %v226 = vadd.f32 %v59, %v225
  %v227 = vpop.f32.mrb[0].mxu0
  %228 = vmatprep.mubr.f32.mxu0 0.0
  %229 = vmatmul.mubr.f32.gmra.mrb[0].mxu0 %v93
  %v230 = vpop.f32.mrb[0].mxu0
  %v231 = vadd.f32 %v59, %v230
  %v232 = vpop.f32.mrb[0].mxu0
  %233 = vmatprep.mubr.f32.mxu0 0.0
  %234 = vmatmul.mubr.f32.gmra.mrb[0].mxu0 %v96
  %v235 = vpop.f32.mrb[0].mxu0
  %v236 = vadd.f32 %v59, %v235
  %v237 = vpop.f32.mrb[0].mxu0
  %238 = vmatprep.mubr.f32.mxu0 0.0
  %239 = vmatmul.mubr.f32.gmra.mrb[0].mxu0 %v99
  %v240 = vpop.f32.mrb[0].mxu0
  %v241 = vadd.f32 %v59, %v240
  %v242 = vpop.f32.mrb[0].mxu0
  %243 = vmatprep.mubr.f32.mxu0 0.0
  %244 = vmatmul.mubr.f32.gmra.mrb[0].mxu0 %v102
  %v245 = vpop.f32.mrb[0].mxu0
  %v246 = vadd.f32 %v59, %v245
  %v247 = vpop.f32.mrb[0].mxu0
  %248 = vmatprep.mubr.f32.mxu0 0.0
  %249 = vmatmul.mubr.f32.gmra.mrb[0].mxu0 %v105
  %v250 = vpop.f32.mrb[0].mxu0
  %v251 = vadd.f32 %v59, %v250
  %v252 = vpop.f32.mrb[0].mxu0
  %253 = vmatprep.mubr.f32.mxu0 0.0
  %254 = vmatmul.mubr.f32.gmra.mrb[0].mxu0 %v108
  %v255 = vpop.f32.mrb[0].mxu0
  %v256 = vadd.f32 %v59, %v255
  %v257 = vpop.f32.mrb[0].mxu0
  %258 = vdwg.mxu0
  %v259 = vmax.f32 %v181, 0.0
  %v260 = vmax.f32 %v186, 0.0
  %v261 = vmax.f32 %v191, 0.0
  %v262 = vmax.f32 %v196, 0.0
  %v263 = vmax.f32 %v201, 0.0
  %v264 = vmax.f32 %v206, 0.0
  %v265 = vmax.f32 %v211, 0.0
  %v266 = vmax.f32 %v216, 0.0
  %v267 = vmax.f32 %v221, 0.0
  %v268 = vmax.f32 %v226, 0.0
  %v269 = vmax.f32 %v231, 0.0
  %v270 = vmax.f32 %v236, 0.0
  %v271 = vmax.f32 %v241, 0.0
  %v272 = vmax.f32 %v246, 0.0
  %v273 = vmax.f32 %v251, 0.0
  %v274 = vmax.f32 %v256, 0.0
  %v276 = vrot.slane %v259, 2
  %v278 = vmax.f32 %v259, %v276
  %v280 = vrot.slane %v278, 4
  %v282 = vmax.f32 %v278, %v280
  %vm283 = vcmask 123904
  %284 = vst.msk [vmem:[#allocation2] sm:$0x3] %vm283, %v282
  %v286 = vrot.slane %v260, 2
  %v288 = vmax.f32 %v260, %v286
  %v290 = vrot.slane %v288, 4
  %v292 = vmax.f32 %v288, %v290
  %v295 = vunpack.c.l.s4 1983009808
  %v296 = vunpack.c.0.s8 %v295
  %v297 = vlaneseq
  %v298 = vshrl.u32 %v297, 7
  %v299 = vsub.s32 %v296, %v298
  %v300 = vrot.slane %v292, %v299
  %301 = vrot.lane.b32.xlu0 %v300, 16
  %v302 = vpop.permute.xlu0 %301
  %vm304 = vcmask 255104
  %305 = vst.msk [vmem:[#allocation2] sm:$0x3] %vm304, %v302
  %v307 = vrot.slane %v261, 2
  %v309 = vmax.f32 %v261, %v307
  %v311 = vrot.slane %v309, 4
  %v313 = vmax.f32 %v309, %v311
  %v316 = vunpack.c.l.s4 1983009808
  %v317 = vunpack.c.0.s8 %v316
  %v318 = vlaneseq
  %v319 = vshrl.u32 %v318, 7
  %v320 = vsub.s32 %v317, %v319
  %v321 = vrot.slane %v313, %v320
  %322 = vrot.lane.b32.xlu0 %v321, 32
  %v323 = vpop.permute.xlu0 %322
  %vm325 = vcmask 386304
  %326 = vst.msk [vmem:[#allocation2] sm:$0x3] %vm325, %v323
  %v328 = vrot.slane %v262, 2
  %v330 = vmax.f32 %v262, %v328
  %v332 = vrot.slane %v330, 4
  %v334 = vmax.f32 %v330, %v332
  %v337 = vunpack.c.l.s4 1983009808
  %v338 = vunpack.c.0.s8 %v337
  %v339 = vlaneseq
  %v340 = vshrl.u32 %v339, 7
  %v341 = vsub.s32 %v338, %v340
  %v342 = vrot.slane %v334, %v341
  %343 = vrot.lane.b32.xlu0 %v342, 48
  %v344 = vpop.permute.xlu0 %343
  %vm346 = vcmask 517504
  %347 = vst.msk [vmem:[#allocation2] sm:$0x3] %vm346, %v344
  %v349 = vrot.slane %v263, 2
  %v351 = vmax.f32 %v263, %v349
  %v353 = vrot.slane %v351, 4
  %v355 = vmax.f32 %v351, %v353
  %v358 = vunpack.c.l.s4 1983009808
  %v359 = vunpack.c.0.s8 %v358
  %v360 = vlaneseq
  %v361 = vshrl.u32 %v360, 7
  %v362 = vsub.s32 %v359, %v361
  %v363 = vrot.slane %v355, %v362
  %364 = vrot.lane.b32.xlu0 %v363, 64
  %v365 = vpop.permute.xlu0 %364
  %vm367 = vcmask 648704
  %368 = vst.msk [vmem:[#allocation2] sm:$0x3] %vm367, %v365
  %v370 = vrot.slane %v264, 2
  %v372 = vmax.f32 %v264, %v370
  %v374 = vrot.slane %v372, 4
  %v376 = vmax.f32 %v372, %v374
  %v379 = vunpack.c.l.s4 1983009808
  %v380 = vunpack.c.0.s8 %v379
  %v381 = vlaneseq
  %v382 = vshrl.u32 %v381, 7
  %v383 = vsub.s32 %v380, %v382
  %v384 = vrot.slane %v376, %v383
  %385 = vrot.lane.b32.xlu0 %v384, 80
  %v386 = vpop.permute.xlu0 %385
  %vm388 = vcmask 779904
  %389 = vst.msk [vmem:[#allocation2] sm:$0x3] %vm388, %v386
  %v391 = vrot.slane %v265, 2
  %v393 = vmax.f32 %v265, %v391
  %v395 = vrot.slane %v393, 4
  %v397 = vmax.f32 %v393, %v395
  %v400 = vunpack.c.l.s4 1983009808
  %v401 = vunpack.c.0.s8 %v400
  %v402 = vlaneseq
  %v403 = vshrl.u32 %v402, 7
  %v404 = vsub.s32 %v401, %v403
  %v405 = vrot.slane %v397, %v404
  %406 = vrot.lane.b32.xlu0 %v405, 96
  %v407 = vpop.permute.xlu0 %406
  %vm409 = vcmask 911104
  %410 = vst.msk [vmem:[#allocation2] sm:$0x3] %vm409, %v407
  %v412 = vrot.slane %v266, 2
  %v414 = vmax.f32 %v266, %v412
  %v416 = vrot.slane %v414, 4
  %v418 = vmax.f32 %v414, %v416
  %v421 = vunpack.c.l.s4 1983009808
  %v422 = vunpack.c.0.s8 %v421
  %v423 = vlaneseq
  %v424 = vshrl.u32 %v423, 7
  %v425 = vsub.s32 %v422, %v424
  %v426 = vrot.slane %v418, %v425
  %427 = vrot.lane.b32.xlu0 %v426, 112
  %v428 = vpop.permute.xlu0 %427
  %vm430 = vcmask 1042304
  %431 = vst.msk [vmem:[#allocation2] sm:$0x3] %vm430, %v428
  %v433 = vrot.slane %v267, 2
  %v435 = vmax.f32 %v267, %v433
  %v437 = vrot.slane %v435, 4
  %v439 = vmax.f32 %v435, %v437
  %440 = vst.msk [vmem:[#allocation2 + $0x2] sm:$0x3] %vm283, %v439
  %v442 = vrot.slane %v268, 2
  %v444 = vmax.f32 %v268, %v442
  %v446 = vrot.slane %v444, 4
  %v448 = vmax.f32 %v444, %v446
  %v451 = vunpack.c.l.s4 1983009808
  %v452 = vunpack.c.0.s8 %v451
  %v453 = vlaneseq
  %v454 = vshrl.u32 %v453, 7
  %v455 = vsub.s32 %v452, %v454
  %v456 = vrot.slane %v448, %v455
  %457 = vrot.lane.b32.xlu0 %v456, 16
  %v458 = vpop.permute.xlu0 %457
  %460 = vst.msk [vmem:[#allocation2 + $0x2] sm:$0x3] %vm304, %v458
  %v462 = vrot.slane %v269, 2
  %v464 = vmax.f32 %v269, %v462
  %v466 = vrot.slane %v464, 4
  %v468 = vmax.f32 %v464, %v466
  %v471 = vunpack.c.l.s4 1983009808
  %v472 = vunpack.c.0.s8 %v471
  %v473 = vlaneseq
  %v474 = vshrl.u32 %v473, 7
  %v475 = vsub.s32 %v472, %v474
  %v476 = vrot.slane %v468, %v475
  %477 = vrot.lane.b32.xlu0 %v476, 32
  %v478 = vpop.permute.xlu0 %477
  %480 = vst.msk [vmem:[#allocation2 + $0x2] sm:$0x3] %vm325, %v478
  %v482 = vrot.slane %v270, 2
  %v484 = vmax.f32 %v270, %v482
  %v486 = vrot.slane %v484, 4
  %v488 = vmax.f32 %v484, %v486
  %v491 = vunpack.c.l.s4 1983009808
  %v492 = vunpack.c.0.s8 %v491
  %v493 = vlaneseq
  %v494 = vshrl.u32 %v493, 7
  %v495 = vsub.s32 %v492, %v494
  %v496 = vrot.slane %v488, %v495
  %497 = vrot.lane.b32.xlu0 %v496, 48
  %v498 = vpop.permute.xlu0 %497
  %500 = vst.msk [vmem:[#allocation2 + $0x2] sm:$0x3] %vm346, %v498
  %v502 = vrot.slane %v271, 2
  %v504 = vmax.f32 %v271, %v502
  %v506 = vrot.slane %v504, 4
  %v508 = vmax.f32 %v504, %v506
  %v511 = vunpack.c.l.s4 1983009808
  %v512 = vunpack.c.0.s8 %v511
  %v513 = vlaneseq
  %v514 = vshrl.u32 %v513, 7
  %v515 = vsub.s32 %v512, %v514
  %v516 = vrot.slane %v508, %v515
  %517 = vrot.lane.b32.xlu0 %v516, 64
  %v518 = vpop.permute.xlu0 %517
  %520 = vst.msk [vmem:[#allocation2 + $0x2] sm:$0x3] %vm367, %v518
  %v522 = vrot.slane %v272, 2
  %v524 = vmax.f32 %v272, %v522
  %v526 = vrot.slane %v524, 4
  %v528 = vmax.f32 %v524, %v526
  %v531 = vunpack.c.l.s4 1983009808
  %v532 = vunpack.c.0.s8 %v531
  %v533 = vlaneseq
  %v534 = vshrl.u32 %v533, 7
  %v535 = vsub.s32 %v532, %v534
  %v536 = vrot.slane %v528, %v535
  %537 = vrot.lane.b32.xlu0 %v536, 80
  %v538 = vpop.permute.xlu0 %537
  %540 = vst.msk [vmem:[#allocation2 + $0x2] sm:$0x3] %vm388, %v538
  %v542 = vrot.slane %v273, 2
  %v544 = vmax.f32 %v273, %v542
  %v546 = vrot.slane %v544, 4
  %v548 = vmax.f32 %v544, %v546
  %v551 = vunpack.c.l.s4 1983009808
  %v552 = vunpack.c.0.s8 %v551
  %v553 = vlaneseq
  %v554 = vshrl.u32 %v553, 7
  %v555 = vsub.s32 %v552, %v554
  %v556 = vrot.slane %v548, %v555
  %557 = vrot.lane.b32.xlu0 %v556, 96
  %v558 = vpop.permute.xlu0 %557
  %560 = vst.msk [vmem:[#allocation2 + $0x2] sm:$0x3] %vm409, %v558
  %v562 = vrot.slane %v274, 2
  %v564 = vmax.f32 %v274, %v562
  %v566 = vrot.slane %v564, 4
  %v568 = vmax.f32 %v564, %v566
  %v571 = vunpack.c.l.s4 1983009808
  %v572 = vunpack.c.0.s8 %v571
  %v573 = vlaneseq
  %v574 = vshrl.u32 %v573, 7
  %v575 = vsub.s32 %v572, %v574
  %v576 = vrot.slane %v568, %v575
  %577 = vrot.lane.b32.xlu0 %v576, 112
  %v578 = vpop.permute.xlu0 %577
  %580 = vst.msk [vmem:[#allocation2 + $0x2] sm:$0x3] %vm430, %v578
  %v581 = vld [vmem:[#allocation2] sm:$0xf]
  %v582 = vld [vmem:[%s3] sm:$0xff]
  %v583 = vld [vmem:[%s3 + $0x8] sm:$0xff]
  %v584 = vld [vmem:[%s3 + $0x10] sm:$0xff]
  %v585 = vld [vmem:[%s3 + $0x18] sm:$0xff]
  %v586 = vld [vmem:[%s3 + $0x20] sm:$0xff]
  %v587 = vld [vmem:[%s3 + $0x28] sm:$0xff]
  %v588 = vld [vmem:[%s3 + $0x30] sm:$0xff]
  %v589 = vld [vmem:[%s3 + $0x38] sm:$0xff]
  %v590 = vld [vmem:[%s3 + $0x40] sm:$0xff]
  %v591 = vld [vmem:[%s3 + $0x48] sm:$0xff]
  %v592 = vld [vmem:[%s3 + $0x50] sm:$0xff]
  %v593 = vld [vmem:[%s3 + $0x58] sm:$0xff]
  %v594 = vld [vmem:[%s3 + $0x60] sm:$0xff]
  %v595 = vld [vmem:[%s3 + $0x68] sm:$0xff]
  %v596 = vld [vmem:[%s3 + $0x70] sm:$0xff]
  %v597 = vld [vmem:[%s3 + $0x78] sm:$0xff]
  %v598 = vld [vmem:[%s3 + $0x80] sm:$0xff]
  %v599 = vld [vmem:[%s3 + $0x88] sm:$0xff]
  %v600 = vld [vmem:[%s3 + $0x90] sm:$0xff]
  %v601 = vld [vmem:[%s3 + $0x98] sm:$0xff]
  %v602 = vld [vmem:[%s3 + $0xa0] sm:$0xff]
  %v603 = vld [vmem:[%s3 + $0xa8] sm:$0xff]
  %v604 = vld [vmem:[%s3 + $0xb0] sm:$0xff]
  %v605 = vld [vmem:[%s3 + $0xb8] sm:$0xff]
  %v606 = vld [vmem:[%s3 + $0xc0] sm:$0xff]
  %v607 = vld [vmem:[%s3 + $0xc8] sm:$0xff]
  %v608 = vld [vmem:[%s3 + $0xd0] sm:$0xff]
  %v609 = vld [vmem:[%s3 + $0xd8] sm:$0xff]
  %v610 = vld [vmem:[%s3 + $0xe0] sm:$0xff]
  %v611 = vld [vmem:[%s3 + $0xe8] sm:$0xff]
  %v612 = vld [vmem:[%s3 + $0xf0] sm:$0xff]
  %v613 = vld [vmem:[%s3 + $0xf8] sm:$0xff]
  %v614 = vld [vmem:[%s4] sm:$0x1]
  %v616 = vlaneseq
  %v617 = vshrl.u32 %v616, 7
  %v618 = vsub.s32 0, %v617
  %v619 = vrot.slane %v614, %v618
  %v623 = vunpack.c.l.s4 1983009808
  %v624 = vunpack.c.0.s8 %v623
  %v625 = vlaneseq
  %v626 = vshrl.u32 %v625, 7
  %v627 = vsub.s32 %v624, %v626
  %v628 = vrot.slane %v581, %v627
  %v629 = vcombine.high %v628, %v628
  %632 = vmatprep.subr.mxu0 0.0
  %633 = vmatpush1.msra.mxu0 %v582
  %634 = vmatprep.subr.mxu0 0.0
  %635 = vmatpush1.msra.mxu0 %v583
  %636 = vmatprep.subr.mxu0 0.0
  %637 = vmatpush1.msra.mxu0 %v584
  %638 = vmatprep.subr.mxu0 0.0
  %639 = vmatpush1.msra.mxu0 %v585
  %640 = vmatprep.subr.mxu0 0.0
  %641 = vmatpush1.msra.mxu0 %v586
  %642 = vmatprep.subr.mxu0 0.0
  %643 = vmatpush1.msra.mxu0 %v587
  %644 = vmatprep.subr.mxu0 0.0
  %645 = vmatpush1.msra.mxu0 %v588
  %646 = vmatprep.subr.mxu0 0.0
  %647 = vmatpush1.msra.mxu0 %v589
  %648 = vmatprep.subr.mxu0 0.0
  %649 = vmatpush1.msra.mxu0 %v590
  %650 = vmatprep.subr.mxu0 0.0
  %651 = vmatpush1.msra.mxu0 %v591
  %652 = vmatprep.subr.mxu0 0.0
  %653 = vmatpush1.msra.mxu0 %v592
  %654 = vmatprep.subr.mxu0 0.0
  %655 = vmatpush1.msra.mxu0 %v593
  %656 = vmatprep.subr.mxu0 0.0
  %657 = vmatpush1.msra.mxu0 %v594
  %658 = vmatprep.subr.mxu0 0.0
  %659 = vmatpush1.msra.mxu0 %v595
  %660 = vmatprep.subr.mxu0 0.0
  %661 = vmatpush1.msra.mxu0 %v596
  %662 = vmatprep.subr.mxu0 0.0
  %663 = vmatpush1.msra.mxu0 %v597
  %664 = vmatprep.subr.mxu0 0.0
  %665 = vmatpush1.msra.mxu0 %v598
  %666 = vmatprep.subr.mxu0 0.0
  %667 = vmatpush1.msra.mxu0 %v599
  %668 = vmatprep.subr.mxu0 0.0
  %669 = vmatpush1.msra.mxu0 %v600
  %670 = vmatprep.subr.mxu0 0.0
  %671 = vmatpush1.msra.mxu0 %v601
  %672 = vmatprep.subr.mxu0 0.0
  %673 = vmatpush1.msra.mxu0 %v602
  %674 = vmatprep.subr.mxu0 0.0
  %675 = vmatpush1.msra.mxu0 %v603
  %676 = vmatprep.subr.mxu0 0.0
  %677 = vmatpush1.msra.mxu0 %v604
  %678 = vmatprep.subr.mxu0 0.0
  %679 = vmatpush1.msra.mxu0 %v605
  %680 = vmatprep.subr.mxu0 0.0
  %681 = vmatpush1.msra.mxu0 %v606
  %682 = vmatprep.subr.mxu0 0.0
  %683 = vmatpush1.msra.mxu0 %v607
  %684 = vmatprep.subr.mxu0 0.0
  %685 = vmatpush1.msra.mxu0 %v608
  %686 = vmatprep.subr.mxu0 0.0
  %687 = vmatpush1.msra.mxu0 %v609
  %688 = vmatprep.subr.mxu0 0.0
  %689 = vmatpush1.msra.mxu0 %v610
  %690 = vmatprep.subr.mxu0 0.0
  %691 = vmatpush1.msra.mxu0 %v611
  %692 = vmatprep.subr.mxu0 0.0
  %693 = vmatpush1.msra.mxu0 %v612
  %694 = vmatprep.subr.mxu0 0.0
  %695 = vmatpush1.msra.mxu0 %v613
  %696 = vmatprep.mubr.f32.mxu0 %v629
  %697 = vmatmul.mubr.f32.gmra.mrb[0].mxu0 %v628
  %v698 = vpop.f32.mrb[0].mxu0
  %v699 = vadd.f32 %v619, %v698
  %v700 = vpop.f32.mrb[0].mxu0
  %701 = vdwg.mxu0
  %v702 = vmax.f32 %v699, 0.0
  %v703 = vld [vmem:[%s5] sm:$0xff]
  %v704 = vld [vmem:[%s5 + $0x8] sm:$0xff]
  %v705 = vld [vmem:[%s5 + $0x10] sm:$0xff]
  %v706 = vld [vmem:[%s5 + $0x18] sm:$0xff]
  %v707 = vld [vmem:[%s5 + $0x20] sm:$0xff]
  %v708 = vld [vmem:[%s5 + $0x28] sm:$0xff]
  %v709 = vld [vmem:[%s5 + $0x30] sm:$0xff]
  %v710 = vld [vmem:[%s5 + $0x38] sm:$0xff]
  %v711 = vld [vmem:[#allocation3] sm:$0x1]
  %v713 = vlaneseq
  %v714 = vshrl.u32 %v713, 7
  %v715 = vsub.s32 0, %v714
  %v716 = vrot.slane %v711, %v715
  %vm718 = vcmask 523264
  %v720 = vsel %vm718, %v702, 0
  %722 = vmatprep.subr.mxu0 0.0
  %723 = vmatpush1.msra.mxu0 %v703
  %724 = vmatprep.subr.mxu0 0.0
  %725 = vmatpush1.msra.mxu0 %v704
  %726 = vmatprep.subr.mxu0 0.0
  %727 = vmatpush1.msra.mxu0 %v705
  %728 = vmatprep.subr.mxu0 0.0
  %729 = vmatpush1.msra.mxu0 %v706
  %730 = vmatprep.subr.mxu0 0.0
  %731 = vmatpush1.msra.mxu0 %v707
  %732 = vmatprep.subr.mxu0 0.0
  %733 = vmatpush1.msra.mxu0 %v708
  %734 = vmatprep.subr.mxu0 0.0
  %735 = vmatpush1.msra.mxu0 %v709
  %736 = vmatprep.subr.mxu0 0.0
  %737 = vmatpush1.msra.mxu0 %v710
  %738 = vmatprep.subr.mxu0 0.0
  %739 = vmatpush1.msra.mxu0 0.0
  %740 = vmatprep.subr.mxu0 0.0
  %741 = vmatpush1.msra.mxu0 0.0
  %742 = vmatprep.subr.mxu0 0.0
  %743 = vmatpush1.msra.mxu0 0.0
  %744 = vmatprep.subr.mxu0 0.0
  %745 = vmatpush1.msra.mxu0 0.0
  %746 = vmatprep.subr.mxu0 0.0
  %747 = vmatpush1.msra.mxu0 0.0
  %748 = vmatprep.subr.mxu0 0.0
  %749 = vmatpush1.msra.mxu0 0.0
  %750 = vmatprep.subr.mxu0 0.0
  %751 = vmatpush1.msra.mxu0 0.0
  %752 = vmatprep.subr.mxu0 0.0
  %753 = vmatpush1.msra.mxu0 0.0
  %754 = vmatprep.subr.mxu0 0.0
  %755 = vmatpush1.msra.mxu0 0.0
  %756 = vmatprep.subr.mxu0 0.0
  %757 = vmatpush1.msra.mxu0 0.0
  %758 = vmatprep.subr.mxu0 0.0
  %759 = vmatpush1.msra.mxu0 0.0
  %760 = vmatprep.subr.mxu0 0.0
  %761 = vmatpush1.msra.mxu0 0.0
  %762 = vmatprep.subr.mxu0 0.0
  %763 = vmatpush1.msra.mxu0 0.0
  %764 = vmatprep.subr.mxu0 0.0
  %765 = vmatpush1.msra.mxu0 0.0
  %766 = vmatprep.subr.mxu0 0.0
  %767 = vmatpush1.msra.mxu0 0.0
  %768 = vmatprep.subr.mxu0 0.0
  %769 = vmatpush1.msra.mxu0 0.0
  %770 = vmatprep.subr.mxu0 0.0
  %771 = vmatpush1.msra.mxu0 0.0
  %772 = vmatprep.subr.mxu0 0.0
  %773 = vmatpush1.msra.mxu0 0.0
  %774 = vmatprep.subr.mxu0 0.0
  %775 = vmatpush1.msra.mxu0 0.0
  %776 = vmatprep.subr.mxu0 0.0
  %777 = vmatpush1.msra.mxu0 0.0
  %778 = vmatprep.subr.mxu0 0.0
  %779 = vmatpush1.msra.mxu0 0.0
  %780 = vmatprep.subr.mxu0 0.0
  %781 = vmatpush1.msra.mxu0 0.0
  %782 = vmatprep.subr.mxu0 0.0
  %783 = vmatpush1.msra.mxu0 0.0
  %784 = vmatprep.subr.mxu0 0.0
  %785 = vmatpush1.msra.mxu0 0.0
  %786 = vmatprep.mubr.f32.mxu0 0.0
  %787 = vmatmul.mubr.f32.gmra.mrb[0].mxu0 %v720
  %v788 = vpop.f32.mrb[0].mxu0
  %v789 = vadd.f32 %v716, %v788
  %v790 = vpop.f32.mrb[0].mxu0
  %791 = vdwg.mxu0
  %v792 = vsub.f32 0.0, %v789
  %v793 = vmul.f32 %v792, 1.442695
  %v794 = vpow.pop %v793
  %v795 = vadd.f32 %v794, 1.0
  %v796 = vrcp.pop %v795
  %v797 = vmul.f32 1.0, %v796
  %vm798 = vcmask 1024
  %799 = vst.msk [vmem:[%s7] sm:$0x3] %vm798, %v797
  // Predicated region
  $region30: #{tumor_net_forward.1} parent=0 // pred_check
    _
  $region31: #{tumor_net_forward.1} parent=0 // pred_check_branch
    %801 = sbr.rel (0) target = $region33
  $region32: #{tumor_net_forward.1} parent=0 // pred_region
    _
  $region33: #{tumor_net_forward.1} parent=0 // pred_fallthru
    _
  // Predicated region
  $region34: #{tumor_net_forward.1} parent=0 // pred_check
    _
  $region35: #{tumor_net_forward.1} parent=0 // pred_check_branch
    %803 = sbr.rel (0) target = $region37
  $region36: #{tumor_net_forward.1} parent=0 // pred_region
    _
  $region37: #{tumor_net_forward.1} parent=0 // pred_fallthru
    _

</llo_original>
